<compile_context>
chip_gen: v7x
topology: tpu7x:2x2x1
jax: 0.10.0
libtpu: 0.0.40
codegen_flags: <defaults>
</compile_context>

<pallas_src>
import functools

import jax
import jax.numpy as jnp
from jax.experimental import pallas as pl
from jax.experimental.pallas import tpu as pltpu


def _int_pow(x, n):
    """x ** n for a static positive integer n via multiplies (no EUP exp/log)."""
    result = None
    base = x
    while n > 0:
        if n & 1:
            result = base if result is None else result * base
        n >>= 1
        if n:
            base = base * base
    return result


def _iscnet_kernel(x_ref, w_ref, b_ref, out_ref, *, p, gem_eps, l2_eps):
    # x_ref: [TB, C, HW] (native NCHW, spatial flattened onto the lane axis)
    # w_ref: [C, FCP]    b_ref: [1, FCP]    out_ref: [TB, 1, FCP]
    x = x_ref[...].astype(jnp.float32)
    xc = jnp.maximum(x, gem_eps)

    # --- GeM pooling: mean over spatial of clamp(x, eps)^p, then ^(1/p)
    p_int = int(p)
    if float(p) == float(p_int) and p_int >= 1:
        xp = _int_pow(xc, p_int)                       # VPU multiplies only
    else:
        xp = xc ** p                                   # generic fallback (EUP)
    m = jnp.mean(xp, axis=-1)                          # [TB, C] (HW lane reduce -> XLU)

    if float(p) == 4.0:
        pooled = jnp.sqrt(jnp.sqrt(m))
    elif float(p) == 2.0:
        pooled = jnp.sqrt(m)
    elif float(p) == 1.0:
        pooled = m
    else:
        pooled = m ** (1.0 / p)

    # --- fc + folded eval-mode BatchNorm: y = pooled @ W' + b'
    y = jnp.dot(pooled.astype(w_ref.dtype), w_ref[...],
                preferred_element_type=jnp.float32) + b_ref[...]

    # --- F.normalize: y / max(||y||, eps) == y * rsqrt(max(sum(y^2), eps^2))
    # (padded cols of y are exactly zero -> no effect on the norm)
    sumsq = jnp.sum(y * y, axis=-1, keepdims=True)
    inv = jax.lax.rsqrt(jnp.maximum(sumsq, l2_eps * l2_eps))
    out_ref[:, 0, :] = (y * inv).astype(out_ref.dtype)


def _pick_batch_tile(B, HW, C, in_itemsize, fcp, *,
                     step_budget_bytes=20 << 20, min_steps=4, tb_cap=256):
    """Largest batch tile whose per-step VMEM footprint fits the budget while
    still leaving >= min_steps grid steps (megacore sharding + pipelining)."""
    # per-batch-row footprint of one pipeline step:
    #   double-buffered input tile (native dtype)
    #   + ~2 full-tile f32 intermediates (upcast + x^p) inside the kernel
    #   + double-buffered f32 output rows
    per_row = 2 * HW * C * in_itemsize + 2 * HW * C * 4 + 2 * fcp * 4
    tb_budget = max(1, step_budget_bytes // per_row)
    tb_steps = max(1, pl.cdiv(B, min_steps))
    tb = int(min(tb_budget, tb_steps, B, tb_cap))
    if tb >= 8:
        tb = (tb // 8) * 8
    return tb


def iscnet_forward(feat_nchw, fc_weight, bn_gamma, bn_beta, bn_rmean, bn_rvar,
                   *, p=4.0, gem_eps=1e-6, bn_eps=1e-5, l2_eps=1e-12):
    """feat_nchw: [B, C, H, W] (last backbone feature map). Returns [B, fc_dim]."""
    B, C, H, W = feat_nchw.shape
    HW = H * W
    fc_dim = fc_weight.shape[0]
    FCP = ((fc_dim + 127) // 128) * 128                # lane-dense output width

    # Native NCHW layout, native dtype: metadata-only reshape, no HBM round trip.
    x = feat_nchw.reshape(B, C, HW)

    # Fold eval-mode BN (running stats) into the fc, in f32: y = pooled @ W' + b'.
    scale = bn_gamma.astype(jnp.float32) / jnp.sqrt(
        bn_rvar.astype(jnp.float32) + bn_eps)                        # [fc_dim]
    w_folded = fc_weight.astype(jnp.float32).T * scale[None, :]      # [C, fc_dim] f32
    b_folded = (bn_beta.astype(jnp.float32)
                - bn_rmean.astype(jnp.float32) * scale)              # [fc_dim]

    # W' in bf16 only when the feature map itself is bf16 (halves resident
    # VMEM/HBM for W'); the fold itself is always done in f32, b' stays f32.
    w_dtype = jnp.bfloat16 if feat_nchw.dtype == jnp.bfloat16 else jnp.float32
    w_p = jnp.zeros((C, FCP), w_dtype).at[:, :fc_dim].set(w_folded.astype(w_dtype))
    b_p = jnp.zeros((1, FCP), jnp.float32).at[:, :fc_dim].set(b_folded[None, :])

    TB = _pick_batch_tile(B, HW, C, x.dtype.itemsize, FCP)
    grid = (pl.cdiv(B, TB),)

    # VMEM budget: double-buffered x/out tiles, in-kernel f32 intermediates,
    # W'/b' counted as double-buffered.  Clamp at 44 MiB (v7x: 64 MiB per TC).
    x_bytes = 2 * TB * HW * C * x.dtype.itemsize
    tmp_bytes = 2 * TB * HW * C * 4
    out_bytes = 2 * TB * FCP * 4
    w_bytes = 2 * (C * FCP * w_p.dtype.itemsize + FCP * 4)
    vmem_limit = int(min(max(x_bytes + tmp_bytes + out_bytes + w_bytes + (4 << 20),
                             16 << 20), 44 << 20))

    kernel = functools.partial(_iscnet_kernel, p=float(p), gem_eps=gem_eps,
                               l2_eps=l2_eps)

    cost = pl.CostEstimate(
        flops=int(4 * B * HW * C + 2 * B * C * FCP + 4 * B * FCP),
        transcendentals=int(2 * B * C + B),
        bytes_accessed=int(B * HW * C * x.dtype.itemsize
                           + C * FCP * w_p.dtype.itemsize + B * FCP * 4),
    )

    out = pl.pallas_call(
        kernel,
        out_shape=jax.ShapeDtypeStruct((B, 1, FCP), jnp.float32),
        grid_spec=pltpu.PrefetchScalarGridSpec(
            num_scalar_prefetch=0,
            grid=grid,
            in_specs=[
                pl.BlockSpec((TB, C, HW), lambda i: (i, 0, 0)),   # batch-tiled x
                pl.BlockSpec((C, FCP), lambda i: (0, 0)),         # resident W'
                pl.BlockSpec((1, FCP), lambda i: (0, 0)),         # resident b'
            ],
            out_specs=pl.BlockSpec((TB, 1, FCP), lambda i: (i, 0, 0)),
        ),
        compiler_params=pltpu.CompilerParams(
            dimension_semantics=("parallel",),
            vmem_limit_bytes=vmem_limit,
        ),
        cost_estimate=cost,
    )(x, w_p, b_p)

    return out[:, 0, :fc_dim]


def _reference(feat, w, gamma, beta, rmean, rvar, *, p=4.0):
    """Pure-JAX mirror of the PyTorch forward (eval mode, backbone output given)."""
    pooled = jnp.mean(jnp.maximum(feat.astype(jnp.float32), 1e-6) ** p,
                      axis=(2, 3)) ** (1.0 / p)
    y = pooled @ w.T.astype(jnp.float32)
    y = (y - rmean) / jnp.sqrt(rvar + 1e-5) * gamma + beta
    n = jnp.sqrt(jnp.sum(y * y, axis=1, keepdims=True))
    return y / jnp.maximum(n, 1e-12)


if __name__ == "__main__":
    # Small shapes: backbone last-stage feature map [B, C, H, W], fc_dim.
    B, C, H, W = 2, 32, 16, 16
    fc_dim = 32
    eval_p = 4.0  # self.eval_p (module not in training mode)

    key = jax.random.PRNGKey(0)
    k_feat, k_fc = jax.random.split(key)

    feat = jax.random.normal(k_feat, (B, C, H, W), dtype=jnp.float32)

    # Deterministic parameter init mirroring _init_params():
    #   fc.weight  <- xavier_normal_  (std = sqrt(2 / (fan_in + fan_out)))
    #   bn.weight  <- 1, bn.bias <- 0, running_mean <- 0, running_var <- 1
    xavier_std = (2.0 / (C + fc_dim)) ** 0.5
    fc_weight = xavier_std * jax.random.normal(k_fc, (fc_dim, C), dtype=jnp.float32)
    bn_gamma = jnp.ones((fc_dim,), jnp.float32)
    bn_beta = jnp.zeros((fc_dim,), jnp.float32)
    bn_rmean = jnp.zeros((fc_dim,), jnp.float32)
    bn_rvar = jnp.ones((fc_dim,), jnp.float32)

    out = iscnet_forward(feat, fc_weight, bn_gamma, bn_beta, bn_rmean, bn_rvar,
                         p=eval_p)
    out = jax.block_until_ready(out)

    ref = _reference(feat, fc_weight, bn_gamma, bn_beta, bn_rmean, bn_rvar,
                     p=eval_p)
    assert out.shape == (B, fc_dim)
    assert jnp.allclose(out, ref, rtol=1e-4, atol=1e-4), "mismatch vs reference"

    print("KERNEL_OK")
</pallas_src>

<mosaic_0001>
module attributes {stable_mosaic.version = 11 : i64} {
  func.func @_iscnet_kernel(%arg0: i32, %arg1: memref<1x32x256xf32, #tpu.memory_space<vmem>>, %arg2: memref<32x128xf32, #tpu.memory_space<vmem>>, %arg3: memref<1x128xf32, #tpu.memory_space<vmem>>, %arg4: memref<1x1x128xf32, #tpu.memory_space<vmem>>) attributes {dimension_semantics = [#tpu.dimension_semantics<parallel>], iteration_bounds = array<i64: 2>, scalar_prefetch = 0 : i64, scratch_operands = 0 : i64, tpu.core_type = #tpu.core_type<tc>, window_params = [{transform_indices = @transform_0, window_bounds = array<i64: 1, 32, 256>}, {pipeline_mode = #tpu.pipeline_mode<synchronous>, transform_indices = @transform_1, window_bounds = array<i64: 32, 128>}, {pipeline_mode = #tpu.pipeline_mode<synchronous>, transform_indices = @transform_2, window_bounds = array<i64: 1, 128>}, {transform_indices = @transform_3, window_bounds = array<i64: 1, 1, 128>}]} {
    %c0 = arith.constant 0 : index
    %c0_0 = arith.constant 0 : index
    %c0_1 = arith.constant 0 : index
    %0 = vector.load %arg1[%c0, %c0_0, %c0_1] : memref<1x32x256xf32, #tpu.memory_space<vmem>>, vector<1x32x256xf32>
    %cst = arith.constant 9.99999997E-7 : f32
    %1 = vector.broadcast %cst : f32 to vector<1x32x256xf32>
    %2 = arith.maximumf %0, %1 : vector<1x32x256xf32>
    %3 = arith.mulf %2, %2 : vector<1x32x256xf32>
    %4 = arith.mulf %3, %3 : vector<1x32x256xf32>
    %cst_2 = arith.constant dense<0.000000e+00> : vector<1x32xf32>
    %5 = vector.multi_reduction <add>, %4, %cst_2 [2] : vector<1x32x256xf32> to vector<1x32xf32>
    %cst_3 = arith.constant 2.560000e+02 : f32
    %6 = vector.broadcast %cst_3 : f32 to vector<1x32xf32>
    %7 = arith.divf %5, %6 : vector<1x32xf32>
    %8 = math.sqrt %7 : vector<1x32xf32>
    %9 = math.sqrt %8 : vector<1x32xf32>
    %c0_4 = arith.constant 0 : index
    %c0_5 = arith.constant 0 : index
    %10 = vector.load %arg2[%c0_4, %c0_5] : memref<32x128xf32, #tpu.memory_space<vmem>>, vector<32x128xf32>
    %cst_6 = arith.constant dense<0.000000e+00> : vector<1x128xf32>
    %11 = tpu.matmul %9, %10, %cst_6 {dimension_numbers = #tpu.dot_dimension_numbers<[1], [0], [0], [1], [0, 0, 1, 1], [], []>} : vector<1x32xf32>, vector<32x128xf32>, vector<1x128xf32> -> vector<1x128xf32>
    %c0_7 = arith.constant 0 : index
    %c0_8 = arith.constant 0 : index
    %12 = vector.load %arg3[%c0_7, %c0_8] : memref<1x128xf32, #tpu.memory_space<vmem>>, vector<1x128xf32>
    %13 = arith.addf %11, %12 : vector<1x128xf32>
    %14 = arith.mulf %13, %13 : vector<1x128xf32>
    %cst_9 = arith.constant dense<0.000000e+00> : vector<1xf32>
    %15 = vector.multi_reduction <add>, %14, %cst_9 [1] : vector<1x128xf32> to vector<1xf32>
    %16 = vector.shape_cast %15 : vector<1xf32> to vector<1x1xf32>
    %cst_10 = arith.constant 1.000000e-24 : f32
    %17 = vector.broadcast %cst_10 : f32 to vector<1x1xf32>
    %18 = arith.maximumf %16, %17 : vector<1x1xf32>
    %19 = math.rsqrt %18 : vector<1x1xf32>
    %20 = vector.broadcast %19 : vector<1x1xf32> to vector<1x128xf32>
    %21 = arith.mulf %13, %20 : vector<1x128xf32>
    %c0_11 = arith.constant 0 : index
    %c0_12 = arith.constant 0 : index
    %c0_13 = arith.constant 0 : index
    %22 = vector.load %arg4[%c0_11, %c0_12, %c0_13] : memref<1x1x128xf32, #tpu.memory_space<vmem>>, vector<1x1x128xf32>
    %23 = vector.shape_cast %22 : vector<1x1x128xf32> to vector<1x128xf32>
    %24 = vector.shape_cast %21 : vector<1x128xf32> to vector<1x1x128xf32>
    tpu.vector_store %arg4[%c0_11, %c0_12, %c0_13], %24 {strides = array<i32>} : memref<1x1x128xf32, #tpu.memory_space<vmem>>, vector<1x1x128xf32>,
    return
  }
  func.func @transform_0(%arg0: i32) -> (i32, i32, i32) {
    %c0_i32 = arith.constant 0 : i32
    %c0_i32_0 = arith.constant 0 : i32
    %c0_i32_1 = arith.constant 0 : i32
    return %arg0, %c0_i32, %c0_i32_0 : i32, i32, i32
  }
  func.func @transform_1(%arg0: i32) -> (i32, i32) {
    %c0_i32 = arith.constant 0 : i32
    %c0_i32_0 = arith.constant 0 : i32
    %c0_i32_1 = arith.constant 0 : i32
    return %c0_i32, %c0_i32_0 : i32, i32
  }
  func.func @transform_2(%arg0: i32) -> (i32, i32) {
    %c0_i32 = arith.constant 0 : i32
    %c0_i32_0 = arith.constant 0 : i32
    %c0_i32_1 = arith.constant 0 : i32
    return %c0_i32, %c0_i32_0 : i32, i32
  }
  func.func @transform_3(%arg0: i32) -> (i32, i32, i32) {
    %c0_i32 = arith.constant 0 : i32
    %c0_i32_0 = arith.constant 0 : i32
    %c0_i32_1 = arith.constant 0 : i32
    return %arg0, %c0_i32, %c0_i32_0 : i32, i32, i32
  }
}

</mosaic_0001>

<llo_original>
// kernel: tpu_custom_call.1
$region0: #{tpu_custom_call.1}
  #allocation0 [shape = 'u32[]', space=smem, size = 0x4, offset = 0x4, fixed_abs, tag = 'smem constant byte address 0x4 - core index']
  #allocation1 [shape = 'u32[144,128]{1,0:T(1,128)}', space=vmem, size = 0x12000, scoped, tag = 'internal scratch']
  %s0 = inlined_call_operand.hbm [shape: f32[2,32,256], index: 0, kind: input, shape index: {}]
  %s1 = inlined_call_operand.hbm [shape: f32[32,128], index: 1, kind: input, shape index: {}]
  %s2 = inlined_call_operand.vmem [shape: f32[1,128], index: 2, kind: input, shape index: {}]
  %s3 = inlined_call_operand.hbm [shape: f32[2,1,128], index: 3, kind: output, shape index: {}]
  %s4 = sld [smem:[#allocation0]]
  $region53: #{tpu_custom_call.1} parent=0
    _
  %s6 = ssub.s32 1, %s4
  %s7 = scalar_select 0, %s6, %s4
  $region1: #{tpu_custom_call.1} parent=0
    #allocation2 [shape = 'u8[65536]{0}', space=vmem, size = 0x10000, scoped, tag = 'input window, operand 0']
    #allocation3 [shape = 's32[2]{0}', space=sflag, size = 0x8, scoped, tag = 'scoped memory for tpu_custom_call.1']
    #allocation4 [shape = 's32[2]{0}', space=sflag, size = 0x8, scoped, tag = 'scoped memory for tpu_custom_call.1']
    #allocation5 [shape = 'u8[16384]{0}', space=vmem, size = 0x4000, scoped, tag = 'input window, operand 1, single buffered']
    #allocation6 [shape = 's32[1]{0}', space=sflag, size = 0x4, scoped, tag = 'scoped memory for tpu_custom_call.1']
    #allocation7 [shape = 'u8[1024]{0}', space=vmem, size = 0x400, scoped, tag = 'output window, operand 0']
    %8 = vsyncpa [#allocation3], 0
    %s9 = scalar_lea.sflag [#allocation3], 1
    %10 = vsyncpa %s9, 0
    %11 = vsyncpa [#allocation6], 0
    %12 = vsyncpa [#allocation4], 0
    %s13 = scalar_lea.sflag [#allocation4], 1
    %14 = vsyncpa %s13, 0
    loop: start=0, step=1, limit=4
    $region2: #{tpu_custom_call.1} parent=1 // loop_pre_header
      _
    $region3: #{tpu_custom_call.1} parent=1 // loop_header
      %s16 = sphi 0, %s20
      %p17 = scmp.ge.s32.totalorder %s16, 4
      %s26 = sphi 0, %s28
      %s29 = sphi 0, %s26
      %s30 = sphi 0, %s29
      %s46 = sphi 0, %s30
      %s50 = sphi 0, %s50
      %s52 = sphi 0, %s50
      %s53 = sphi 0, %s52
      %s67 = sphi 0, %s53
      %s71 = sphi 0, %s71
      %s73 = sphi 0, %s71
      %s74 = sphi 0, %s73
      %s88 = sphi 0, %s74
      %s94 = sphi 0, %s96
      %s97 = sphi 0, %s94
      %s98 = sphi 0, %s97
      %s114 = sphi 0, %s98
    $region4: #{tpu_custom_call.1} parent=1 // loop_header_branch
      %19 = sbr.rel (%p17) target = $region8
    $region5: #{tpu_custom_call.1} parent=1 // loop_body
      %s21 = ssub.s32 %s16, 1
      %s22 = ssub.s32 %s16, 2
      %s23 = sadd.s32 %s16, 1
      %s24 = ssub.s32 %s16, %s23
      %p25 = scmp.eq.s32.totalorder %s24, 0
      %s27 = sadd.s32 %s26, 1
      %s28 = scalar_select %p25, %s26, %s27
      %p31 = pneg %p25
      %p32 = scmp.eq.s32.totalorder %s16, 1
      %p33 = por %p31, %p32
      %p34 = scmp.ne.s32.totalorder %s26, %s29
      %p35 = scmp.eq.s32.totalorder %s16, 0
      %p36 = por %p34, %p35
      %p37 = scmp.ne.s32.totalorder %s26, %s29
      %p38 = scmp.eq.s32.totalorder %s21, 1
      %p39 = por %p37, %p38
      %p40 = scmp.ne.s32.totalorder %s29, %s30
      %p41 = scmp.eq.s32.totalorder %s21, 0
      %p42 = por %p40, %p41
      %p43 = scmp.ne.s32.totalorder %s29, %s30
      %p44 = scmp.eq.s32.totalorder %s22, 1
      %p45 = por %p43, %p44
      %p47 = scmp.ne.s32.totalorder %s30, %s46
      %p48 = scmp.eq.s32.totalorder %s22, 0
      %p49 = por %p47, %p48
      %s51 = sadd.s32 %s50, 1
      %p54 = scmp.eq.s32.totalorder %s16, 1
      %p55 = scmp.ne.s32.totalorder %s50, %s52
      %p56 = scmp.eq.s32.totalorder %s16, 0
      %p57 = por %p55, %p56
      %p58 = scmp.ne.s32.totalorder %s50, %s52
      %p59 = scmp.eq.s32.totalorder %s21, 1
      %p60 = por %p58, %p59
      %p61 = scmp.ne.s32.totalorder %s52, %s53
      %p62 = scmp.eq.s32.totalorder %s21, 0
      %p63 = por %p61, %p62
      %p64 = scmp.ne.s32.totalorder %s52, %s53
      %p65 = scmp.eq.s32.totalorder %s22, 1
      %p66 = por %p64, %p65
      %p68 = scmp.ne.s32.totalorder %s53, %s67
      %p69 = scmp.eq.s32.totalorder %s22, 0
      %p70 = por %p68, %p69
      %s72 = sadd.s32 %s71, 1
      %p75 = scmp.eq.s32.totalorder %s16, 1
      %p76 = scmp.ne.s32.totalorder %s71, %s73
      %p77 = scmp.eq.s32.totalorder %s16, 0
      %p78 = por %p76, %p77
      %p79 = scmp.ne.s32.totalorder %s71, %s73
      %p80 = scmp.eq.s32.totalorder %s21, 1
      %p81 = por %p79, %p80
      %p82 = scmp.ne.s32.totalorder %s73, %s74
      %p83 = scmp.eq.s32.totalorder %s21, 0
      %p84 = por %p82, %p83
      %p85 = scmp.ne.s32.totalorder %s73, %s74
      %p86 = scmp.eq.s32.totalorder %s22, 1
      %p87 = por %p85, %p86
      %p89 = scmp.ne.s32.totalorder %s74, %s88
      %p90 = scmp.eq.s32.totalorder %s22, 0
      %p91 = por %p89, %p90
      %s92 = ssub.s32 %s16, %s23
      %p93 = scmp.eq.s32.totalorder %s92, 0
      %s95 = sadd.s32 %s94, 1
      %s96 = scalar_select %p93, %s94, %s95
      %p99 = pneg %p93
      %p100 = scmp.eq.s32.totalorder %s16, 1
      %p101 = por %p99, %p100
      %p102 = scmp.ne.s32.totalorder %s94, %s97
      %p103 = scmp.eq.s32.totalorder %s16, 0
      %p104 = por %p102, %p103
      %p105 = scmp.ne.s32.totalorder %s94, %s97
      %p106 = scmp.eq.s32.totalorder %s21, 1
      %p107 = por %p105, %p106
      %p108 = scmp.ne.s32.totalorder %s97, %s98
      %p109 = scmp.eq.s32.totalorder %s21, 0
      %p110 = por %p108, %p109
      %p111 = scmp.ne.s32.totalorder %s97, %s98
      %p112 = scmp.eq.s32.totalorder %s22, 1
      %p113 = por %p111, %p112
      %p115 = scmp.ne.s32.totalorder %s98, %s114
      %p116 = scmp.eq.s32.totalorder %s22, 0
      %p117 = por %p115, %p116
      %p118 = scmp.le.s32.totalorder 1, %s16
      %p119 = scmp.lt.s32.totalorder %s16, 3
      %p120 = pnand %p118, %p119
      %p121 = pneg %p120
      // Predicated region
      $region9: #{tpu_custom_call.1} parent=5 // pred_check
        _
      $region10: #{tpu_custom_call.1} parent=5 // pred_check_branch
        %123 = sbr.rel (%p120) target = $region12
      $region11: #{tpu_custom_call.1} parent=5 // pred_region
        %s124 = ssub.s32 %s16, 1
        // Predicated region
        $region13: #{tpu_custom_call.1} parent=11 // pred_check
          %p125 = pneg %p63
        $region14: #{tpu_custom_call.1} parent=11 // pred_check_branch
          %127 = sbr.rel (%p125) target = $region16
        $region15: #{tpu_custom_call.1} parent=11 // pred_region
          %s129 = ssub.s32 512, 512
          %130 = vsyncadd [#allocation6], %s129
          %s131 = sshll.u32 [#allocation5], 4
          %s132 = int_to_ptr.vmem [resolvable:$true] %s131
          %137 = dma.hbm_to_vmem [thread:$0]  %s1, 512, %s132, [#allocation6], 128, 128, 8
        $region16: #{tpu_custom_call.1} parent=11 // pred_fallthru
          _
        // Predicated region
        $region17: #{tpu_custom_call.1} parent=11 // pred_check
          %p138 = pneg %p84
        $region18: #{tpu_custom_call.1} parent=11 // pred_check_branch
          %140 = sbr.rel (%p138) target = $region20
        $region19: #{tpu_custom_call.1} parent=11 // pred_region
          _
        $region20: #{tpu_custom_call.1} parent=11 // pred_fallthru
          _
      $region12: #{tpu_custom_call.1} parent=5 // pred_fallthru
        _
      %p141 = scmp.lt.s32.totalorder %s16, 2
      // Predicated region
      $region21: #{tpu_custom_call.1} parent=5 // pred_check
        %p142 = pneg %p141
      $region22: #{tpu_custom_call.1} parent=5 // pred_check_branch
        %144 = sbr.rel (%p142) target = $region24
      $region23: #{tpu_custom_call.1} parent=5 // pred_region
        // Predicated region
        $region25: #{tpu_custom_call.1} parent=23 // pred_check
          %p145 = pneg %p36
        $region26: #{tpu_custom_call.1} parent=23 // pred_check_branch
          %147 = sbr.rel (%p145) target = $region28
        $region27: #{tpu_custom_call.1} parent=23 // pred_region
          %s148 = sand.u32 %s26, 1
          %s149 = scalar_lea.sflag [#allocation3], %s148
          %s150 = sand.u32 %s26, 1
          %s151 = smul.addr %s150, 64
          %s152 = scalar_lea.vmem [#allocation2], %s151
          %s154 = ssub.s32 1024, 1024
          %155 = vsyncadd %s149, %s154
          %s156 = smul.addr %s16, 8
          %s157 = smul.addr %s156, 128
          %s158 = scalar_lea.hbm %s0, %s157
          %s159 = sshll.u32 %s152, 4
          %s160 = int_to_ptr.vmem [resolvable:$true] %s159
          %165 = dma.hbm_to_vmem [thread:$0]  %s158, 1024, %s160, %s149, 256, 256, 16
        $region28: #{tpu_custom_call.1} parent=23 // pred_fallthru
          _
      $region24: #{tpu_custom_call.1} parent=5 // pred_fallthru
        _
      %p166 = scmp.le.s32.totalorder 1, %s16
      %p167 = scmp.lt.s32.totalorder %s16, 3
      %p168 = pnand %p166, %p167
      %p169 = pneg %p168
      // Predicated region
      $region29: #{tpu_custom_call.1} parent=5 // pred_check
        _
      $region30: #{tpu_custom_call.1} parent=5 // pred_check_branch
        %171 = sbr.rel (%p168) target = $region32
      $region31: #{tpu_custom_call.1} parent=5 // pred_region
        %s172 = ssub.s32 %s16, 1
        %s173 = sand.u32 %s29, 1
        %s174 = scalar_lea.sflag [#allocation3], %s173
        %s175 = sand.u32 %s29, 1
        %s176 = smul.addr %s175, 64
        %s177 = scalar_lea.vmem [#allocation2], %s176
        // Predicated region
        $region33: #{tpu_custom_call.1} parent=31 // pred_check
          %p178 = pneg %p42
        $region34: #{tpu_custom_call.1} parent=31 // pred_check_branch
          %180 = sbr.rel (%p178) target = $region36
        $region35: #{tpu_custom_call.1} parent=31 // pred_region
          %181 = dma.done %s174, 1024
        $region36: #{tpu_custom_call.1} parent=31 // pred_fallthru
          _
        // Predicated region
        $region37: #{tpu_custom_call.1} parent=31 // pred_check
          %p182 = pneg %p63
        $region38: #{tpu_custom_call.1} parent=31 // pred_check_branch
          %184 = sbr.rel (%p182) target = $region40
        $region39: #{tpu_custom_call.1} parent=31 // pred_region
          %185 = dma.done [#allocation6], 512
        $region40: #{tpu_custom_call.1} parent=31 // pred_fallthru
          _
        %s186 = sand.u32 %s29, 1
        %s187 = scalar_lea.sflag [#allocation3], %s186
        %s188 = sand.u32 %s29, 1
        %s189 = smul.addr %s188, 64
        %s190 = scalar_lea.vmem [#allocation2], %s189
        %p191 = pneg %p42
        %p192 = pneg %p39
        %p193 = pneg %p63
        %p194 = pneg %p60
        %p195 = pneg %p84
        %p196 = pneg %p81
        %p197 = pneg %p110
        %p198 = pneg %p107
        %s199 = sand.u32 %s97, 1
        %s200 = scalar_lea.sflag [#allocation4], %s199
        %s201 = sand.u32 %s97, 1
        %s202 = scalar_lea.vmem [#allocation7], %s201
        %v203 = vld [vmem:[%s177] sm:$0xff]
        %v204 = vld [vmem:[%s177 + $0x8] sm:$0xff]
        %v205 = vld [vmem:[%s177 + $0x10] sm:$0xff]
        %v206 = vld [vmem:[%s177 + $0x18] sm:$0xff]
        %v207 = vld [vmem:[%s177 + $0x20] sm:$0xff]
        %v208 = vld [vmem:[%s177 + $0x28] sm:$0xff]
        %v209 = vld [vmem:[%s177 + $0x30] sm:$0xff]
        %v210 = vld [vmem:[%s177 + $0x38] sm:$0xff]
        %v211 = vmax.f32 %v203, 1e-06
        %v212 = vmax.f32 %v204, 1e-06
        %v213 = vmax.f32 %v205, 1e-06
        %v214 = vmax.f32 %v206, 1e-06
        %v215 = vmax.f32 %v207, 1e-06
        %v216 = vmax.f32 %v208, 1e-06
        %v217 = vmax.f32 %v209, 1e-06
        %v218 = vmax.f32 %v210, 1e-06
        %v219 = vmul.f32 %v211, %v211
        %v220 = vmul.f32 %v212, %v212
        %v221 = vmul.f32 %v213, %v213
        %v222 = vmul.f32 %v214, %v214
        %v223 = vmul.f32 %v215, %v215
        %v224 = vmul.f32 %v216, %v216
        %v225 = vmul.f32 %v217, %v217
        %v226 = vmul.f32 %v218, %v218
        %v227 = vmul.f32 %v219, %v219
        %v228 = vmul.f32 %v220, %v220
        %v229 = vmul.f32 %v221, %v221
        %v230 = vmul.f32 %v222, %v222
        %v231 = vmul.f32 %v223, %v223
        %v232 = vmul.f32 %v224, %v224
        %v233 = vmul.f32 %v225, %v225
        %v234 = vmul.f32 %v226, %v226
        %v235 = vadd.f32 %v227, %v228
        %236 = vadd.xlane.f32.xlu0 %v235
        %v237 = vpop.xlane.xlu0 %236
        %v238 = vadd.f32 %v229, %v230
        %239 = vadd.xlane.f32.xlu0 %v238
        %v240 = vpop.xlane.xlu0 %239
        %v241 = vadd.f32 %v231, %v232
        %242 = vadd.xlane.f32.xlu0 %v241
        %v243 = vpop.xlane.xlu0 %242
        %v244 = vadd.f32 %v233, %v234
        %245 = vadd.xlane.f32.xlu0 %v244
        %v246 = vpop.xlane.xlu0 %245
        %v247 = vrcp.pop 256.0
        %v248 = vmul.f32 %v237, %v247
        %v249 = vmul.f32 %v240, %v247
        %v250 = vmul.f32 %v243, %v247
        %v251 = vmul.f32 %v246, %v247
        %v252 = vrsqrt.pop %v248
        %v253 = vmul.f32 %v248, %v252
        %vm254 = vcmp.eq.f32.partialorder %v248, inf
        %v255 = vsel %vm254, %v248, %v253
        %vm256 = vcmp.eq.f32.partialorder %v248, 0.0
        %v257 = vand.u32 %v248, 2147483648
        %v258 = vsel %vm256, %v257, %v255
        %v259 = vrsqrt.pop %v249
        %v260 = vmul.f32 %v249, %v259
        %vm261 = vcmp.eq.f32.partialorder %v249, inf
        %v262 = vsel %vm261, %v249, %v260
        %vm263 = vcmp.eq.f32.partialorder %v249, 0.0
        %v264 = vand.u32 %v249, 2147483648
        %v265 = vsel %vm263, %v264, %v262
        %v266 = vrsqrt.pop %v250
        %v267 = vmul.f32 %v250, %v266
        %vm268 = vcmp.eq.f32.partialorder %v250, inf
        %v269 = vsel %vm268, %v250, %v267
        %vm270 = vcmp.eq.f32.partialorder %v250, 0.0
        %v271 = vand.u32 %v250, 2147483648
        %v272 = vsel %vm270, %v271, %v269
        %v273 = vrsqrt.pop %v251
        %v274 = vmul.f32 %v251, %v273
        %vm275 = vcmp.eq.f32.partialorder %v251, inf
        %v276 = vsel %vm275, %v251, %v274
        %vm277 = vcmp.eq.f32.partialorder %v251, 0.0
        %v278 = vand.u32 %v251, 2147483648
        %v279 = vsel %vm277, %v278, %v276
        %v280 = vrsqrt.pop %v258
        %v281 = vmul.f32 %v258, %v280
        %vm282 = vcmp.eq.f32.partialorder %v258, inf
        %v283 = vsel %vm282, %v258, %v281
        %vm284 = vcmp.eq.f32.partialorder %v258, 0.0
        %v285 = vand.u32 %v258, 2147483648
        %v286 = vsel %vm284, %v285, %v283
        %v287 = vrsqrt.pop %v265
        %v288 = vmul.f32 %v265, %v287
        %vm289 = vcmp.eq.f32.partialorder %v265, inf
        %v290 = vsel %vm289, %v265, %v288
        %vm291 = vcmp.eq.f32.partialorder %v265, 0.0
        %v292 = vand.u32 %v265, 2147483648
        %v293 = vsel %vm291, %v292, %v290
        %v294 = vrsqrt.pop %v272
        %v295 = vmul.f32 %v272, %v294
        %vm296 = vcmp.eq.f32.partialorder %v272, inf
        %v297 = vsel %vm296, %v272, %v295
        %vm298 = vcmp.eq.f32.partialorder %v272, 0.0
        %v299 = vand.u32 %v272, 2147483648
        %v300 = vsel %vm298, %v299, %v297
        %v301 = vrsqrt.pop %v279
        %v302 = vmul.f32 %v279, %v301
        %vm303 = vcmp.eq.f32.partialorder %v279, inf
        %v304 = vsel %vm303, %v279, %v302
        %vm305 = vcmp.eq.f32.partialorder %v279, 0.0
        %v306 = vand.u32 %v279, 2147483648
        %v307 = vsel %vm305, %v306, %v304
        %v308 = vld [vmem:[#allocation5] sm:$0xff]
        %v309 = vld [vmem:[#allocation5 + $0x8] sm:$0xff]
        %v310 = vld [vmem:[#allocation5 + $0x10] sm:$0xff]
        %v311 = vld [vmem:[#allocation5 + $0x18] sm:$0xff]
        %v312 = vld [vmem:[%s2] sm:$0x1]
        %v317 = vlaneseq
        %v318 = vand.u32 %v317, 127
        %v319 = vlaneseq
        %v320 = vshrl.u32 %v319, 7
        %v321 = vsub.s32 %v318, %v320
        %v322 = vrot.slane %v286, %v321
        %v323 = vadd.s32 %v318, 4294967288
        %v324 = vlaneseq
        %v325 = vshrl.u32 %v324, 7
        %v326 = vsub.s32 %v323, %v325
        %v327 = vrot.slane %v293, %v326
        %vm328 = vcmask 130112
        %v329 = vsel %vm328, %v327, %v322
        %v330 = vadd.s32 %v318, 4294967280
        %v331 = vlaneseq
        %v332 = vshrl.u32 %v331, 7
        %v333 = vsub.s32 %v330, %v332
        %v334 = vrot.slane %v300, %v333
        %vm335 = vcmask 195712
        %v336 = vsel %vm335, %v334, %v329
        %v337 = vadd.s32 %v318, 4294967272
        %v338 = vlaneseq
        %v339 = vshrl.u32 %v338, 7
        %v340 = vsub.s32 %v337, %v339
        %v341 = vrot.slane %v307, %v340
        %vm342 = vcmask 261312
        %v343 = vsel %vm342, %v341, %v336
        %vm344 = vcmask 261120
        %v345 = vsel %vm344, %v343, 0
        %347 = vmatprep.subr.mxu0 0.0
        %348 = vmatpush1.msra.mxu0 %v308
        %349 = vmatprep.subr.mxu0 0.0
        %350 = vmatpush1.msra.mxu0 %v309
        %351 = vmatprep.subr.mxu0 0.0
        %352 = vmatpush1.msra.mxu0 %v310
        %353 = vmatprep.subr.mxu0 0.0
        %354 = vmatpush1.msra.mxu0 %v311
        %355 = vmatprep.subr.mxu0 0.0
        %356 = vmatpush1.msra.mxu0 0.0
        %357 = vmatprep.subr.mxu0 0.0
        %358 = vmatpush1.msra.mxu0 0.0
        %359 = vmatprep.subr.mxu0 0.0
        %360 = vmatpush1.msra.mxu0 0.0
        %361 = vmatprep.subr.mxu0 0.0
        %362 = vmatpush1.msra.mxu0 0.0
        %363 = vmatprep.subr.mxu0 0.0
        %364 = vmatpush1.msra.mxu0 0.0
        %365 = vmatprep.subr.mxu0 0.0
        %366 = vmatpush1.msra.mxu0 0.0
        %367 = vmatprep.subr.mxu0 0.0
        %368 = vmatpush1.msra.mxu0 0.0
        %369 = vmatprep.subr.mxu0 0.0
        %370 = vmatpush1.msra.mxu0 0.0
        %371 = vmatprep.subr.mxu0 0.0
        %372 = vmatpush1.msra.mxu0 0.0
        %373 = vmatprep.subr.mxu0 0.0
        %374 = vmatpush1.msra.mxu0 0.0
        %375 = vmatprep.subr.mxu0 0.0
        %376 = vmatpush1.msra.mxu0 0.0
        %377 = vmatprep.subr.mxu0 0.0
        %378 = vmatpush1.msra.mxu0 0.0
        %379 = vmatprep.subr.mxu0 0.0
        %380 = vmatpush1.msra.mxu0 0.0
        %381 = vmatprep.subr.mxu0 0.0
        %382 = vmatpush1.msra.mxu0 0.0
        %383 = vmatprep.subr.mxu0 0.0
        %384 = vmatpush1.msra.mxu0 0.0
        %385 = vmatprep.subr.mxu0 0.0
        %386 = vmatpush1.msra.mxu0 0.0
        %387 = vmatprep.subr.mxu0 0.0
        %388 = vmatpush1.msra.mxu0 0.0
        %389 = vmatprep.subr.mxu0 0.0
        %390 = vmatpush1.msra.mxu0 0.0
        %391 = vmatprep.subr.mxu0 0.0
        %392 = vmatpush1.msra.mxu0 0.0
        %393 = vmatprep.subr.mxu0 0.0
        %394 = vmatpush1.msra.mxu0 0.0
        %395 = vmatprep.subr.mxu0 0.0
        %396 = vmatpush1.msra.mxu0 0.0
        %397 = vmatprep.subr.mxu0 0.0
        %398 = vmatpush1.msra.mxu0 0.0
        %399 = vmatprep.subr.mxu0 0.0
        %400 = vmatpush1.msra.mxu0 0.0
        %401 = vmatprep.subr.mxu0 0.0
        %402 = vmatpush1.msra.mxu0 0.0
        %403 = vmatprep.subr.mxu0 0.0
        %404 = vmatpush1.msra.mxu0 0.0
        %405 = vmatprep.subr.mxu0 0.0
        %406 = vmatpush1.msra.mxu0 0.0
        %407 = vmatprep.subr.mxu0 0.0
        %408 = vmatpush1.msra.mxu0 0.0
        %409 = vmatprep.subr.mxu0 0.0
        %410 = vmatpush1.msra.mxu0 0.0
        %411 = vmatprep.mubr.f32.mxu0 0.0
        %412 = vmatmul.mubr.f32.gmra.mrb[0].mxu0 %v345
        %v413 = vpop.f32.mrb[0].mxu0
        %v414 = vadd.f32 %v312, %v413
        %v415 = vpop.f32.mrb[0].mxu0
        %416 = vdwg.mxu0
        %v417 = vmul.f32 %v414, %v414
        %vm418 = vcmask 1040384
        %v419 = vsel %vm418, %v417, 0.0
        %420 = vadd.xlane.f32.xlu0 %v419
        %v421 = vpop.xlane.xlu0 %420
        %v422 = vmax.f32 %v421, 1e-24
        %v423 = vrsqrt.pop %v422
        %v424 = vmul.f32 %v414, %v423
        %425 = vst [vmem:[%s202] sm:$0x1] %v424
        %s426 = sand.u32 %s97, 1
        %s427 = scalar_lea.sflag [#allocation4], %s426
        %s428 = sand.u32 %s97, 1
        %s429 = scalar_lea.vmem [#allocation7], %s428
        // Predicated region
        $region41: #{tpu_custom_call.1} parent=31 // pred_check
          %p430 = pneg %p107
        $region42: #{tpu_custom_call.1} parent=31 // pred_check_branch
          %432 = sbr.rel (%p430) target = $region44
        $region43: #{tpu_custom_call.1} parent=31 // pred_region
          %s434 = ssub.s32 16, 16
          %435 = vsyncadd %s427, %s434
          %s436 = smul.addr %s21, 16
          %s437 = scalar_lea.hbm %s3, %s436
          %s439 = sshll.u32 %s429, 4
          %s440 = int_to_ptr.vmem [resolvable:$true] %s439
          %442 = dma.vmem_to_hbm [thread:$0]  %s440, 16, %s437, %s427
        $region44: #{tpu_custom_call.1} parent=31 // pred_fallthru
          _
      $region32: #{tpu_custom_call.1} parent=5 // pred_fallthru
        _
      %p443 = scmp.le.s32.totalorder 2, %s16
      // Predicated region
      $region45: #{tpu_custom_call.1} parent=5 // pred_check
        %p444 = pneg %p443
      $region46: #{tpu_custom_call.1} parent=5 // pred_check_branch
        %446 = sbr.rel (%p444) target = $region48
      $region47: #{tpu_custom_call.1} parent=5 // pred_region
        %s447 = ssub.s32 %s16, 2
        // Predicated region
        $region49: #{tpu_custom_call.1} parent=47 // pred_check
          %p448 = pneg %p113
        $region50: #{tpu_custom_call.1} parent=47 // pred_check_branch
          %450 = sbr.rel (%p448) target = $region52
        $region51: #{tpu_custom_call.1} parent=47 // pred_region
          %s451 = sand.u32 %s98, 1
          %s452 = scalar_lea.sflag [#allocation4], %s451
          %s453 = sand.u32 %s98, 1
          %s454 = scalar_lea.vmem [#allocation7], %s453
          %455 = dma.done %s452, 16
        $region52: #{tpu_custom_call.1} parent=47 // pred_fallthru
          _
      $region48: #{tpu_custom_call.1} parent=5 // pred_fallthru
        _
    $region6: #{tpu_custom_call.1} parent=1 // loop_footer
      %s20 = sadd.s32 1, %s16
    $region7: #{tpu_custom_call.1} parent=1 // loop_footer_branch
      %15 = sbr.rel target = $region3
    $region8: #{tpu_custom_call.1} parent=1 // loop_exit
      _
    %456 = vsyncpa [#allocation3], 1
    %s457 = scalar_lea.sflag [#allocation3], 1
    %458 = vsyncpa %s457, 1
    %459 = vsyncpa [#allocation6], 1
    %460 = vsyncpa [#allocation4], 1
    %s461 = scalar_lea.sflag [#allocation4], 1
    %462 = vsyncpa %s461, 1

</llo_original>
